<compile_context>
chip_gen: v6e
topology: v6e:2x2x1
jax: 0.10.0
libtpu: 0.0.40
codegen_flags: <defaults>
</compile_context>

<pallas_src>
import functools

import jax
import jax.numpy as jnp
from jax import lax
from jax.experimental import pallas as pl
from jax.experimental.pallas import tpu as pltpu

EPS = 1e-5


def _hash_u32(x):
    """splitmix32-style integer hash on uint32 vectors (wraps mod 2**32)."""
    x = x ^ (x >> 16)
    x = x * jnp.uint32(0x7FEB352D)
    x = x ^ (x >> 15)
    x = x * jnp.uint32(0x846CA68B)
    x = x ^ (x >> 16)
    return x


def _residual_ln_kernel(seed_ref, x_ref, ln_w_ref, ln_b_ref, w_ref, b_ref,
                        out_ref, *, dropout_p, training, tile_rows, hidden):
    # ---- LayerNorm over the hidden (lane) dim: fused single-pass sums ----
    x = x_ref[...].astype(jnp.float32)                        # (TILE_R, H)
    inv_h = jnp.float32(1.0 / hidden)
    s1 = jnp.sum(x, axis=-1, keepdims=True)
    s2 = jnp.sum(x * x, axis=-1, keepdims=True)
    mean = s1 * inv_h
    var = jnp.maximum(s2 * inv_h - mean * mean, 0.0)          # biased var, like nn.LayerNorm
    xn = (x - mean) * lax.rsqrt(var + EPS)
    xn = xn * ln_w_ref[...] + ln_b_ref[...]                   # affine, broadcast (1, H)

    # ---- sublayer: Linear(H -> H) on the MXU (bf16 inputs, f32 accumulate) ----
    y = jnp.dot(xn.astype(jnp.bfloat16), w_ref[...],
                preferred_element_type=jnp.float32) + b_ref[...]

    # ---- Dropout (training) via counter-based hash PRNG, integer threshold ----
    if training and dropout_p > 0.0:
        keep_prob = 1.0 - dropout_p
        threshold = jnp.uint32(min(int(round(keep_prob * 2.0 ** 32)), 2 ** 32 - 1))
        row0 = pl.program_id(0) * tile_rows                   # per-tile offset -> unique mask
        rows = lax.broadcasted_iota(jnp.int32, y.shape, 0) + row0
        cols = lax.broadcasted_iota(jnp.int32, y.shape, 1)
        ctr = rows * hidden + cols                            # unique per element
        ctr = ctr ^ (seed_ref[0] * jnp.int32(0x61C88647))     # fold in the call seed
        bits = _hash_u32(ctr.astype(jnp.uint32))
        keep = bits < threshold
        y = jnp.where(keep, y * jnp.float32(1.0 / keep_prob), 0.0)

    # ---- residual add (re-read x so it is not held live across the matmul) ----
    out_ref[...] = (x_ref[...].astype(jnp.float32) + y).astype(out_ref.dtype)


def _pick_tile_rows(n_rows, hidden, max_vmem_bytes=8 * 1024 * 1024):
    """Largest row tile that is a multiple of 8, divides n_rows, and fits a VMEM budget."""
    # 2x double-buffered f32 row tiles (x in + out) must fit the budget; cap at 512 rows.
    cap = max(8, max_vmem_bytes // (4 * hidden * 4))
    cap = min(cap, 512)
    if n_rows <= 8:
        return n_rows
    best = None
    t = 8
    while t <= min(n_rows, cap):
        if n_rows % t == 0:
            best = t
        t += 8
    return best if best is not None else n_rows


def residual_connection_layer_norm(x, ln_w, ln_b, w, b, seed, *,
                                   dropout_p=0.5, training=True):
    """x: (B, S, H) float32. Returns (B, S, H) float32."""
    B, S, H = x.shape
    R = B * S
    x2 = x.reshape(R, H)

    tile_r = _pick_tile_rows(R, H)
    grid = (R // tile_r,)

    kernel = functools.partial(_residual_ln_kernel,
                               dropout_p=float(dropout_p), training=bool(training),
                               tile_rows=tile_r, hidden=H)

    # Advisory cost hint for XLA scheduling around the custom call.
    cost = pl.CostEstimate(
        flops=2 * R * H * H + 10 * R * H,
        transcendentals=0,
        bytes_accessed=2 * R * H * 4 + H * H * 2 + 3 * H * 4,
    )

    # NOTE: for production shapes H should be a multiple of 128 (256 on v6e/v7x)
    # to keep the lane axis dense; the demo below keeps the module's tiny H.
    out = pl.pallas_call(
        kernel,
        out_shape=jax.ShapeDtypeStruct((R, H), x.dtype),
        grid=grid,
        in_specs=[
            pl.BlockSpec(memory_space=pltpu.MemorySpace.SMEM),   # seed scalar (1,)
            pl.BlockSpec((tile_r, H), lambda i: (i, 0)),         # x row tile
            pl.BlockSpec((1, H), lambda i: (0, 0)),              # ln weight (resident)
            pl.BlockSpec((1, H), lambda i: (0, 0)),              # ln bias   (resident)
            pl.BlockSpec((H, H), lambda i: (0, 0)),              # linear W, bf16 (resident)
            pl.BlockSpec((1, H), lambda i: (0, 0)),              # linear b  (resident)
        ],
        out_specs=pl.BlockSpec((tile_r, H), lambda i: (i, 0)),
        compiler_params=pltpu.CompilerParams(
            dimension_semantics=("parallel",)),
        cost_estimate=cost,
    )(seed, x2,
      ln_w.reshape(1, H).astype(jnp.float32),
      ln_b.reshape(1, H).astype(jnp.float32),
      w.astype(jnp.bfloat16),
      b.reshape(1, H).astype(jnp.float32))

    return out.reshape(B, S, H)


if __name__ == "__main__":
    B, S, H = 2, 8, 32

    key = jax.random.PRNGKey(0)
    kx, kw, kb, klw, klb = jax.random.split(key, 5)

    x = jax.random.normal(kx, (B, S, H), dtype=jnp.float32)

    # Deterministic synthetic parameters.
    ln_w = jnp.ones((H,), jnp.float32) + 0.1 * jax.random.normal(klw, (H,), jnp.float32)
    ln_b = 0.1 * jax.random.normal(klb, (H,), jnp.float32)
    bound = 1.0 / (H ** 0.5)
    w = jax.random.uniform(kw, (H, H), jnp.float32, minval=-bound, maxval=bound)
    b = jax.random.uniform(kb, (H,), jnp.float32, minval=-bound, maxval=bound)

    seed = jnp.array([1234], dtype=jnp.int32)

    # Training path (dropout active).
    out = residual_connection_layer_norm(x, ln_w, ln_b, w, b, seed,
                                         dropout_p=0.5, training=True)
    jax.block_until_ready(out)
    assert out.shape == x.shape
    assert bool(jnp.all(jnp.isfinite(out)))
    # Roughly half of the sublayer outputs are dropped (out == x there).
    drop_frac = float(jnp.mean((out == x).astype(jnp.float32)))
    assert 0.2 < drop_frac < 0.8, drop_frac

    # Eval path (dropout disabled) vs a pure-JAX reference.
    out_eval = residual_connection_layer_norm(x, ln_w, ln_b, w, b, seed,
                                              dropout_p=0.5, training=False)
    jax.block_until_ready(out_eval)

    s1 = jnp.sum(x, -1, keepdims=True)
    s2 = jnp.sum(x * x, -1, keepdims=True)
    mean = s1 / H
    var = jnp.maximum(s2 / H - mean * mean, 0.0)
    xn = (x - mean) * jax.lax.rsqrt(var + EPS) * ln_w + ln_b
    y_ref = jnp.einsum("bsh,hk->bsk",
                       xn.astype(jnp.bfloat16), w.astype(jnp.bfloat16),
                       preferred_element_type=jnp.float32) + b
    ref = x + y_ref
    assert jnp.allclose(out_eval, ref, atol=1e-2, rtol=1e-2), \
        float(jnp.max(jnp.abs(out_eval - ref)))

    print("KERNEL_OK")
</pallas_src>

<mosaic_0001>
module attributes {stable_mosaic.version = 11 : i64} {
  func.func @_residual_ln_kernel(%arg0: i32, %arg1: memref<1xi32, #tpu.memory_space<smem>>, %arg2: memref<16x32xf32, #tpu.memory_space<vmem>>, %arg3: memref<1x32xf32, #tpu.memory_space<vmem>>, %arg4: memref<1x32xf32, #tpu.memory_space<vmem>>, %arg5: memref<32x32xbf16, #tpu.memory_space<vmem>>, %arg6: memref<1x32xf32, #tpu.memory_space<vmem>>, %arg7: memref<16x32xf32, #tpu.memory_space<vmem>>) attributes {dimension_semantics = [#tpu.dimension_semantics<parallel>], iteration_bounds = array<i64: 1>, scalar_prefetch = 0 : i64, scratch_operands = 0 : i64, tpu.core_type = #tpu.core_type<tc>, window_params = [{transform_indices = @transform_0, window_bounds = array<i64: 1>}, {transform_indices = @transform_1, window_bounds = array<i64: 16, 32>}, {pipeline_mode = #tpu.pipeline_mode<synchronous>, transform_indices = @transform_2, window_bounds = array<i64: 1, 32>}, {pipeline_mode = #tpu.pipeline_mode<synchronous>, transform_indices = @transform_3, window_bounds = array<i64: 1, 32>}, {pipeline_mode = #tpu.pipeline_mode<synchronous>, transform_indices = @transform_4, window_bounds = array<i64: 32, 32>}, {pipeline_mode = #tpu.pipeline_mode<synchronous>, transform_indices = @transform_5, window_bounds = array<i64: 1, 32>}, {transform_indices = @transform_6, window_bounds = array<i64: 16, 32>}]} {
    %c0 = arith.constant 0 : index
    %c0_0 = arith.constant 0 : index
    %0 = vector.load %arg2[%c0, %c0_0] : memref<16x32xf32, #tpu.memory_space<vmem>>, vector<16x32xf32>
    %cst = arith.constant dense<0.000000e+00> : vector<16xf32>
    %1 = vector.multi_reduction <add>, %0, %cst [1] : vector<16x32xf32> to vector<16xf32>
    %2 = vector.shape_cast %1 : vector<16xf32> to vector<16x1xf32>
    %3 = arith.mulf %0, %0 : vector<16x32xf32>
    %cst_1 = arith.constant dense<0.000000e+00> : vector<16xf32>
    %4 = vector.multi_reduction <add>, %3, %cst_1 [1] : vector<16x32xf32> to vector<16xf32>
    %5 = vector.shape_cast %4 : vector<16xf32> to vector<16x1xf32>
    %cst_2 = arith.constant 3.125000e-02 : f32
    %6 = vector.broadcast %cst_2 : f32 to vector<16x1xf32>
    %7 = arith.mulf %2, %6 : vector<16x1xf32>
    %cst_3 = arith.constant 3.125000e-02 : f32
    %8 = vector.broadcast %cst_3 : f32 to vector<16x1xf32>
    %9 = arith.mulf %5, %8 : vector<16x1xf32>
    %10 = arith.mulf %7, %7 : vector<16x1xf32>
    %11 = arith.subf %9, %10 : vector<16x1xf32>
    %cst_4 = arith.constant 0.000000e+00 : f32
    %12 = vector.broadcast %cst_4 : f32 to vector<16x1xf32>
    %13 = arith.maximumf %11, %12 : vector<16x1xf32>
    %14 = vector.broadcast %7 : vector<16x1xf32> to vector<16x32xf32>
    %15 = arith.subf %0, %14 : vector<16x32xf32>
    %cst_5 = arith.constant 9.99999974E-6 : f32
    %16 = vector.broadcast %cst_5 : f32 to vector<16x1xf32>
    %17 = arith.addf %13, %16 : vector<16x1xf32>
    %18 = math.rsqrt %17 : vector<16x1xf32>
    %19 = vector.broadcast %18 : vector<16x1xf32> to vector<16x32xf32>
    %20 = arith.mulf %15, %19 : vector<16x32xf32>
    %c0_6 = arith.constant 0 : index
    %c0_7 = arith.constant 0 : index
    %21 = vector.load %arg3[%c0_6, %c0_7] : memref<1x32xf32, #tpu.memory_space<vmem>>, vector<1x32xf32>
    %22 = vector.broadcast %21 : vector<1x32xf32> to vector<16x32xf32>
    %23 = arith.mulf %20, %22 : vector<16x32xf32>
    %c0_8 = arith.constant 0 : index
    %c0_9 = arith.constant 0 : index
    %24 = vector.load %arg4[%c0_8, %c0_9] : memref<1x32xf32, #tpu.memory_space<vmem>>, vector<1x32xf32>
    %25 = vector.broadcast %24 : vector<1x32xf32> to vector<16x32xf32>
    %26 = arith.addf %23, %25 : vector<16x32xf32>
    %27 = arith.truncf %26 : vector<16x32xf32> to vector<16x32xbf16>
    %c0_10 = arith.constant 0 : index
    %c0_11 = arith.constant 0 : index
    %28 = vector.load %arg5[%c0_10, %c0_11] : memref<32x32xbf16, #tpu.memory_space<vmem>>, vector<32x32xbf16>
    %cst_12 = arith.constant dense<0.000000e+00> : vector<16x32xf32>
    %29 = tpu.matmul %27, %28, %cst_12 {dimension_numbers = #tpu.dot_dimension_numbers<[1], [0], [0], [1], [0, 0, 1, 1], [], []>} : vector<16x32xbf16>, vector<32x32xbf16>, vector<16x32xf32> -> vector<16x32xf32>
    %c0_13 = arith.constant 0 : index
    %c0_14 = arith.constant 0 : index
    %30 = vector.load %arg6[%c0_13, %c0_14] : memref<1x32xf32, #tpu.memory_space<vmem>>, vector<1x32xf32>
    %31 = vector.broadcast %30 : vector<1x32xf32> to vector<16x32xf32>
    %32 = arith.addf %29, %31 : vector<16x32xf32>
    %c16_i32 = arith.constant 16 : i32
    %33 = arith.muli %arg0, %c16_i32 : i32
    %34 = tpu.iota {dimensions = array<i32: 0>} : vector<16x32xi32>
    %35 = vector.broadcast %33 : i32 to vector<16x32xi32>
    %36 = arith.addi %34, %35 : vector<16x32xi32>
    %37 = tpu.iota {dimensions = array<i32: 1>} : vector<16x32xi32>
    %c32_i32 = arith.constant 32 : i32
    %38 = vector.broadcast %c32_i32 : i32 to vector<16x32xi32>
    %39 = arith.muli %36, %38 : vector<16x32xi32>
    %40 = arith.addi %39, %37 : vector<16x32xi32>
    %c0_15 = arith.constant 0 : index
    %41 = memref.load %arg1[%c0_15] : memref<1xi32, #tpu.memory_space<smem>>
    %c1640531527_i32 = arith.constant 1640531527 : i32
    %42 = arith.muli %41, %c1640531527_i32 : i32
    %43 = vector.broadcast %42 : i32 to vector<16x32xi32>
    %44 = arith.xori %40, %43 : vector<16x32xi32>
    %c16_i32_16 = arith.constant 16 : i32
    %45 = vector.broadcast %c16_i32_16 : i32 to vector<16x32xi32>
    %46 = arith.shrui %44, %45 : vector<16x32xi32>
    %47 = arith.xori %44, %46 : vector<16x32xi32>
    %c2146121005_i32 = arith.constant 2146121005 : i32
    %48 = vector.broadcast %c2146121005_i32 : i32 to vector<16x32xi32>
    %49 = arith.muli %47, %48 : vector<16x32xi32>
    %c15_i32 = arith.constant 15 : i32
    %50 = vector.broadcast %c15_i32 : i32 to vector<16x32xi32>
    %51 = arith.shrui %49, %50 : vector<16x32xi32>
    %52 = arith.xori %49, %51 : vector<16x32xi32>
    %c-2073254261_i32 = arith.constant -2073254261 : i32
    %53 = vector.broadcast %c-2073254261_i32 : i32 to vector<16x32xi32>
    %54 = arith.muli %52, %53 : vector<16x32xi32>
    %c16_i32_17 = arith.constant 16 : i32
    %55 = vector.broadcast %c16_i32_17 : i32 to vector<16x32xi32>
    %56 = arith.shrui %54, %55 : vector<16x32xi32>
    %57 = arith.xori %54, %56 : vector<16x32xi32>
    %c-2147483648_i32 = arith.constant -2147483648 : i32
    %58 = vector.broadcast %c-2147483648_i32 : i32 to vector<16x32xi32>
    %59 = arith.cmpi ult, %57, %58 : vector<16x32xi32>
    %cst_18 = arith.constant 2.000000e+00 : f32
    %60 = vector.broadcast %cst_18 : f32 to vector<16x32xf32>
    %61 = arith.mulf %32, %60 : vector<16x32xf32>
    %cst_19 = arith.constant 0.000000e+00 : f32
    %62 = vector.broadcast %cst_19 : f32 to vector<16x32xf32>
    %63 = arith.select %59, %61, %62 : vector<16x32xi1>, vector<16x32xf32>
    %c0_20 = arith.constant 0 : index
    %c0_21 = arith.constant 0 : index
    %64 = vector.load %arg2[%c0_20, %c0_21] : memref<16x32xf32, #tpu.memory_space<vmem>>, vector<16x32xf32>
    %65 = arith.addf %64, %63 : vector<16x32xf32>
    %c0_22 = arith.constant 0 : index
    %c0_23 = arith.constant 0 : index
    %66 = vector.load %arg7[%c0_22, %c0_23] : memref<16x32xf32, #tpu.memory_space<vmem>>, vector<16x32xf32>
    tpu.vector_store %arg7[%c0_22, %c0_23], %65 {strides = array<i32>} : memref<16x32xf32, #tpu.memory_space<vmem>>, vector<16x32xf32>,
    return
  }
  func.func @transform_0(%arg0: i32) -> i32 {
    %c0_i32 = arith.constant 0 : i32
    %c0_i32_0 = arith.constant 0 : i32
    return %c0_i32 : i32
  }
  func.func @transform_1(%arg0: i32) -> (i32, i32) {
    %c0_i32 = arith.constant 0 : i32
    %c0_i32_0 = arith.constant 0 : i32
    return %arg0, %c0_i32 : i32, i32
  }
  func.func @transform_2(%arg0: i32) -> (i32, i32) {
    %c0_i32 = arith.constant 0 : i32
    %c0_i32_0 = arith.constant 0 : i32
    %c0_i32_1 = arith.constant 0 : i32
    return %c0_i32, %c0_i32_0 : i32, i32
  }
  func.func @transform_3(%arg0: i32) -> (i32, i32) {
    %c0_i32 = arith.constant 0 : i32
    %c0_i32_0 = arith.constant 0 : i32
    %c0_i32_1 = arith.constant 0 : i32
    return %c0_i32, %c0_i32_0 : i32, i32
  }
  func.func @transform_4(%arg0: i32) -> (i32, i32) {
    %c0_i32 = arith.constant 0 : i32
    %c0_i32_0 = arith.constant 0 : i32
    %c0_i32_1 = arith.constant 0 : i32
    return %c0_i32, %c0_i32_0 : i32, i32
  }
  func.func @transform_5(%arg0: i32) -> (i32, i32) {
    %c0_i32 = arith.constant 0 : i32
    %c0_i32_0 = arith.constant 0 : i32
    %c0_i32_1 = arith.constant 0 : i32
    return %c0_i32, %c0_i32_0 : i32, i32
  }
  func.func @transform_6(%arg0: i32) -> (i32, i32) {
    %c0_i32 = arith.constant 0 : i32
    %c0_i32_0 = arith.constant 0 : i32
    return %arg0, %c0_i32 : i32, i32
  }
}

</mosaic_0001>

<llo_original>
// kernel: tpu_custom_call.1
$region0: #{tpu_custom_call.1}
  #allocation0 [shape = 'u32[]', space=smem, size = 0x4, offset = 0x4, fixed_abs, tag = 'smem constant byte address 0x4 - core index']
  #allocation1 [shape = 'u32[144,128]{1,0:T(1,128)}', space=vmem, size = 0x12000, scoped, tag = 'internal scratch']
  #allocation2 [shape = 's32[1]{0:T(128)S(6)}', space=smem, size = 0x200, scoped, tag = 'scoped memory for tpu_custom_call.1']
  %s0 = inlined_call_operand.<no memory space> [shape: s32[1], index: 0, kind: input, shape index: {}]
  %s1 = inlined_call_operand.hbm [shape: f32[16,32], index: 1, kind: input, shape index: {}]
  %s2 = inlined_call_operand.vmem [shape: f32[1,32], index: 2, kind: input, shape index: {}]
  %s3 = inlined_call_operand.vmem [shape: f32[1,32], index: 3, kind: input, shape index: {}]
  %s4 = inlined_call_operand.hbm [shape: bf16[32,32], index: 4, kind: input, shape index: {}]
  %s5 = inlined_call_operand.vmem [shape: f32[1,32], index: 5, kind: input, shape index: {}]
  %s6 = inlined_call_operand.hbm [shape: f32[16,32], index: 6, kind: output, shape index: {}]
  %s7 = sld [smem:[#allocation0]]
  $region42: #{tpu_custom_call.1} parent=0
    _
  %s9 = ssub.s32 1, %s7
  %s10 = scalar_select 0, %s9, %s7
  %11 = sst [smem:[#allocation2]] %s0
  $region1: #{tpu_custom_call.1} parent=0
    #allocation3 [shape = 'u8[8192]{0}', space=vmem, size = 0x2000, scoped, tag = 'input window, operand 1, single buffered']
    #allocation4 [shape = 's32[1]{0}', space=sflag, size = 0x4, scoped, tag = 'scoped memory for tpu_custom_call.1']
    #allocation5 [shape = 's32[1]{0}', space=sflag, size = 0x4, scoped, tag = 'scoped memory for tpu_custom_call.1']
    #allocation6 [shape = 'u8[8192]{0}', space=vmem, size = 0x2000, scoped, tag = 'input window, operand 4, single buffered']
    #allocation7 [shape = 's32[1]{0}', space=sflag, size = 0x4, scoped, tag = 'scoped memory for tpu_custom_call.1']
    #allocation8 [shape = 'u8[8192]{0}', space=vmem, size = 0x2000, scoped, tag = 'output window, operand 0, single buffered']
    %12 = vsyncpa [#allocation4], 0
    %13 = vsyncpa [#allocation7], 0
    %14 = vsyncpa [#allocation5], 0
    // Predicated region
    $region2: #{tpu_custom_call.1} parent=1 // pred_check
      _
    $region3: #{tpu_custom_call.1} parent=1 // pred_check_branch
      %16 = sbr.rel (0) target = $region5
    $region4: #{tpu_custom_call.1} parent=1 // pred_region
      _
    $region5: #{tpu_custom_call.1} parent=1 // pred_fallthru
      _
    // Predicated region
    $region6: #{tpu_custom_call.1} parent=1 // pred_check
      _
    $region7: #{tpu_custom_call.1} parent=1 // pred_check_branch
      %18 = sbr.rel (0) target = $region9
    $region8: #{tpu_custom_call.1} parent=1 // pred_region
      %s20 = ssub.s32 256, 256
      %21 = vsyncadd [#allocation4], %s20
      %s22 = sshll.u32 [#allocation3], 4
      %s23 = int_to_ptr.vmem [resolvable:$true] %s22
      %28 = dma.hbm_to_vmem [thread:$0]  %s1, 256, %s23, [#allocation4], 128, 128, 8
    $region9: #{tpu_custom_call.1} parent=1 // pred_fallthru
      _
    // Predicated region
    $region10: #{tpu_custom_call.1} parent=1 // pred_check
      _
    $region11: #{tpu_custom_call.1} parent=1 // pred_check_branch
      %30 = sbr.rel (0) target = $region13
    $region12: #{tpu_custom_call.1} parent=1 // pred_region
      _
    $region13: #{tpu_custom_call.1} parent=1 // pred_fallthru
      _
    // Predicated region
    $region14: #{tpu_custom_call.1} parent=1 // pred_check
      _
    $region15: #{tpu_custom_call.1} parent=1 // pred_check_branch
      %32 = sbr.rel (0) target = $region17
    $region16: #{tpu_custom_call.1} parent=1 // pred_region
      _
    $region17: #{tpu_custom_call.1} parent=1 // pred_fallthru
      _
    // Predicated region
    $region18: #{tpu_custom_call.1} parent=1 // pred_check
      _
    $region19: #{tpu_custom_call.1} parent=1 // pred_check_branch
      %34 = sbr.rel (0) target = $region21
    $region20: #{tpu_custom_call.1} parent=1 // pred_region
      %s36 = ssub.s32 256, 256
      %37 = vsyncadd [#allocation7], %s36
      %s38 = sshll.u32 [#allocation6], 4
      %s39 = int_to_ptr.vmem [resolvable:$true] %s38
      %44 = dma.hbm_to_vmem [thread:$0]  %s4, 256, %s39, [#allocation7], 64, 64, 4
    $region21: #{tpu_custom_call.1} parent=1 // pred_fallthru
      _
    // Predicated region
    $region22: #{tpu_custom_call.1} parent=1 // pred_check
      _
    $region23: #{tpu_custom_call.1} parent=1 // pred_check_branch
      %46 = sbr.rel (0) target = $region25
    $region24: #{tpu_custom_call.1} parent=1 // pred_region
      _
    $region25: #{tpu_custom_call.1} parent=1 // pred_fallthru
      _
    // Predicated region
    $region26: #{tpu_custom_call.1} parent=1 // pred_check
      _
    $region27: #{tpu_custom_call.1} parent=1 // pred_check_branch
      %48 = sbr.rel (0) target = $region29
    $region28: #{tpu_custom_call.1} parent=1 // pred_region
      %49 = dma.done [#allocation4], 256
    $region29: #{tpu_custom_call.1} parent=1 // pred_fallthru
      _
    // Predicated region
    $region30: #{tpu_custom_call.1} parent=1 // pred_check
      _
    $region31: #{tpu_custom_call.1} parent=1 // pred_check_branch
      %51 = sbr.rel (0) target = $region33
    $region32: #{tpu_custom_call.1} parent=1 // pred_region
      %52 = dma.done [#allocation7], 256
    $region33: #{tpu_custom_call.1} parent=1 // pred_fallthru
      _
    %v54 = vld [vmem:[#allocation3] sm:$0xff]
    %v55 = vld [vmem:[#allocation3 + $0x8] sm:$0xff]
    %vm56 = vcmask 261120
    %v57 = vsel %vm56, %v54, 0.0
    %58 = vadd.xlane.f32.xlu0 %v57
    %v59 = vpop.xlane.xlu0 %58
    %v60 = vsel %vm56, %v55, 0.0
    %61 = vadd.xlane.f32.xlu0 %v60
    %v62 = vpop.xlane.xlu0 %61
    %v63 = vmul.f32 %v54, %v54
    %v64 = vmul.f32 %v55, %v55
    %v65 = vsel %vm56, %v63, 0.0
    %66 = vadd.xlane.f32.xlu0 %v65
    %v67 = vpop.xlane.xlu0 %66
    %v68 = vsel %vm56, %v64, 0.0
    %69 = vadd.xlane.f32.xlu0 %v68
    %v70 = vpop.xlane.xlu0 %69
    %v71 = vmul.f32 %v59, 0.03125
    %v72 = vmul.f32 %v62, 0.03125
    %v73 = vmul.f32 %v67, 0.03125
    %v74 = vmul.f32 %v70, 0.03125
    %v75 = vmul.f32 %v71, %v71
    %v76 = vmul.f32 %v72, %v72
    %v77 = vsub.f32 %v73, %v75
    %v78 = vsub.f32 %v74, %v76
    %v79 = vmax.f32 %v77, 0.0
    %v80 = vmax.f32 %v78, 0.0
    %v81 = vsub.f32 %v54, %v71
    %v82 = vsub.f32 %v55, %v72
    %v83 = vadd.f32 %v79, 1e-05
    %v84 = vadd.f32 %v80, 1e-05
    %v85 = vrsqrt.pop %v83
    %v86 = vrsqrt.pop %v84
    %v87 = vmul.f32 %v81, %v85
    %v88 = vmul.f32 %v82, %v86
    %v89 = vld [vmem:[%s2] sm:$0x1]
    %v91 = vlaneseq
    %v92 = vshrl.u32 %v91, 7
    %v93 = vsub.s32 0, %v92
    %v94 = vrot.slane %v89, %v93
    %v96 = vmul.f32 %v87, %v94
    %v97 = vmul.f32 %v88, %v94
    %v98 = vld [vmem:[%s3] sm:$0x1]
    %v100 = vlaneseq
    %v101 = vshrl.u32 %v100, 7
    %v102 = vsub.s32 0, %v101
    %v103 = vrot.slane %v98, %v102
    %v105 = vadd.f32 %v96, %v103
    %v106 = vadd.f32 %v97, %v103
    %v107 = vpack.c.bf16 %v106, %v105
    %v108 = vld [vmem:[#allocation6] sm:$0xf]
    %v109 = vld [vmem:[#allocation6 + $0x4] sm:$0xf]
    %v110 = vld [vmem:[#allocation6 + $0x8] sm:$0xf]
    %v111 = vld [vmem:[#allocation6 + $0xc] sm:$0xf]
    %v112 = vld [vmem:[%s5] sm:$0x1]
    %v114 = vlaneseq
    %v115 = vshrl.u32 %v114, 7
    %v116 = vsub.s32 0, %v115
    %v117 = vrot.slane %v112, %v116
    %v123 = vunpack.c.l.b16 %v108
    %v124 = vunpack.c.l.b16 %v109
    %v125 = vunpack.c.l.b16 %v110
    %v126 = vunpack.c.l.b16 %v111
    %v127 = vpack.c.b16 %v124, %v123
    %v128 = vpack.c.b16 %v126, %v125
    %v132 = vsel %vm56, %v107, 0
    %134 = vmatprep.subr.bf16.mxu0 0
    %135 = vmatpush1.bf16.msra.mxu0 0
    %136 = vmatprep.subr.bf16.mxu0 0
    %137 = vmatpush1.bf16.msra.mxu0 0
    %138 = vmatprep.subr.bf16.mxu0 0
    %139 = vmatpush1.bf16.msra.mxu0 0
    %140 = vmatprep.subr.bf16.mxu0 0
    %141 = vmatpush1.bf16.msra.mxu0 0
    %142 = vmatprep.subr.bf16.mxu0 0
    %143 = vmatpush1.bf16.msra.mxu0 0
    %144 = vmatprep.subr.bf16.mxu0 0
    %145 = vmatpush1.bf16.msra.mxu0 0
    %146 = vmatprep.subr.bf16.mxu0 0
    %147 = vmatpush1.bf16.msra.mxu0 %v128
    %148 = vmatprep.subr.bf16.mxu0 0
    %149 = vmatpush1.bf16.msra.mxu0 %v127
    %150 = vmatprep.subr.bf16.mxu0 0
    %151 = vmatpush2.bf16.msra.mxu0 0
    %152 = vmatprep.subr.bf16.mxu0 0
    %153 = vmatpush2.bf16.msra.mxu0 0
    %154 = vmatprep.subr.bf16.mxu0 0
    %155 = vmatpush2.bf16.msra.mxu0 0
    %156 = vmatprep.subr.bf16.mxu0 0
    %157 = vmatpush2.bf16.msra.mxu0 0
    %158 = vmatprep.subr.bf16.mxu0 0
    %159 = vmatpush2.bf16.msra.mxu0 0
    %160 = vmatprep.subr.bf16.mxu0 0
    %161 = vmatpush2.bf16.msra.mxu0 0
    %162 = vmatprep.subr.bf16.mxu0 0
    %163 = vmatpush2.bf16.msra.mxu0 0
    %164 = vmatprep.subr.bf16.mxu0 0
    %165 = vmatpush2.bf16.msra.mxu0 0
    %166 = vmatprep.mubr.bf16.mxu0 0
    %167 = vmatmul.mubr.bf16.gmra.mxu0 %v132
    %v168 = vpop.f32.mrf.mxu0
    %v169 = vadd.f32 %v117, %v168
    %v170 = vpop.f32.mrf.mxu0
    %v171 = vpop.f32.mrf.mxu0
    %v172 = vadd.f32 %v117, %v171
    %v173 = vpop.f32.mrf.mxu0
    %174 = vdwg.mxu0
    %s175 = smul.u32 0, 16
    %v176 = vlaneseq
    %v177 = vshrl.u32 %v176, 7
    %v178 = vadd.s32 %v177, 8
    %v179 = vstv %s175
    %v180 = vadd.s32 %v177, %v179
    %v181 = vadd.s32 %v178, %v179
    %v182 = vlaneseq
    %v183 = vand.u32 %v182, 127
    %v184 = vmul.u32 %v180, 32
    %v185 = vmul.u32 %v181, 32
    %v186 = vadd.s32 %v184, %v183
    %v187 = vadd.s32 %v185, %v183
    %s188 = sld [smem:[#allocation2]]
    %s189 = smul.u32 %s188, 1640531527
    %v190 = vstv %s189
    %v191 = vxor.u32 %v186, %v190
    %v192 = vxor.u32 %v187, %v190
    %v193 = vshrl.u32 %v191, 16
    %v194 = vshrl.u32 %v192, 16
    %v195 = vxor.u32 %v191, %v193
    %v196 = vxor.u32 %v192, %v194
    %v197 = vmul.u32 %v195, 2146121005
    %v198 = vmul.u32 %v196, 2146121005
    %v199 = vshrl.u32 %v197, 15
    %v200 = vshrl.u32 %v198, 15
    %v201 = vxor.u32 %v197, %v199
    %v202 = vxor.u32 %v198, %v200
    %v203 = vmul.u32 %v201, 2221713035
    %v204 = vmul.u32 %v202, 2221713035
    %v205 = vshrl.u32 %v203, 16
    %v206 = vshrl.u32 %v204, 16
    %v207 = vxor.u32 %v203, %v205
    %v208 = vxor.u32 %v204, %v206
    %vm209 = vcmp.lt.u32.totalorder %v207, 2147483648
    %vm210 = vcmp.lt.u32.totalorder %v208, 2147483648
    %v211 = vmul.f32 %v169, 2.0
    %v212 = vmul.f32 %v172, 2.0
    %v213 = vsel %vm209, %v211, 0.0
    %v214 = vsel %vm210, %v212, 0.0
    %v215 = vadd.f32 %v54, %v213
    %v216 = vadd.f32 %v55, %v214
    %217 = vst.msk [vmem:[#allocation8] sm:$0xff] %vm56, %v215
    %218 = vst.msk [vmem:[#allocation8 + $0x8] sm:$0xff] %vm56, %v216
    // Predicated region
    $region34: #{tpu_custom_call.1} parent=1 // pred_check
      _
    $region35: #{tpu_custom_call.1} parent=1 // pred_check_branch
      %220 = sbr.rel (0) target = $region37
    $region36: #{tpu_custom_call.1} parent=1 // pred_region
      %s222 = ssub.s32 256, 256
      %223 = vsyncadd [#allocation5], %s222
      %s224 = sshll.u32 [#allocation8], 4
      %s225 = int_to_ptr.vmem [resolvable:$true] %s224
      %230 = dma.vmem_to_hbm [thread:$0]  %s225, 256, %s6, [#allocation5], 128, 128, 8
    $region37: #{tpu_custom_call.1} parent=1 // pred_fallthru
      _
    // Predicated region
    $region38: #{tpu_custom_call.1} parent=1 // pred_check
      _
    $region39: #{tpu_custom_call.1} parent=1 // pred_check_branch
      %232 = sbr.rel (0) target = $region41
    $region40: #{tpu_custom_call.1} parent=1 // pred_region
      %233 = dma.done [#allocation5], 256
    $region41: #{tpu_custom_call.1} parent=1 // pred_fallthru
      _
    %234 = vsyncpa [#allocation4], 1
    %235 = vsyncpa [#allocation7], 1
    %236 = vsyncpa [#allocation5], 1

</llo_original>
